<compile_context>
chip_gen: v5e
topology: v5e:2x2
jax: 0.10.0
libtpu: 0.0.40
codegen_flags: <defaults>
</compile_context>

<pallas_src>
import functools

import jax
import jax.numpy as jnp
from jax.experimental import pallas as pl
from jax.experimental.pallas import tpu as pltpu

_LANE = 128
_SUBLANE = 8
_MIB = 1024 * 1024


def _round_up(x, m):
    return ((x + m - 1) // m) * m


def _tpu_memory_model():
    """(vmem_capacity_bytes, data_budget_bytes, tensorcores_per_chip).

    Falls back to the most conservative envelope (v7x: 64 MiB VMEM / TC,
    2 TCs) when hardware info is unavailable (e.g. interpret mode).
    """
    vmem_cap = 64 * _MIB
    try:
        info = pltpu.get_tpu_info()
        vmem_cap = int(getattr(info, "vmem_capacity_bytes", vmem_cap))
    except Exception:  # no TPU / interpret mode / old jax
        pass
    # v5e/v6e expose 128 MiB VMEM and a single TensorCore per chip; v7x has
    # 64 MiB per TC and two TCs sharing the chip.
    n_tc = 2 if vmem_cap <= 64 * _MIB else 1
    # ~60% of capacity for the per-step data footprint leaves headroom for
    # Mosaic internal scratch, the (tiny) param tiles and double-buffer slack.
    budget = int(vmem_cap * 0.6)
    return vmem_cap, budget, n_tc


def _choose_tile_rows(rows, feat, in_bytes, out_bytes, budget, n_tc):
    """Largest sublane-aligned row tile whose per-step VMEM footprint fits.

    Footprint per step = double-buffered input + output tiles (native dtype)
    plus ~3 full-tile f32 intermediates created inside the kernel body
    (upcast x, diff, broadcast g*inv).
    """
    per_row = feat * (2 * (in_bytes + out_bytes) + 3 * 4)
    tile = max(_SUBLANE, (budget // per_row) // _SUBLANE * _SUBLANE)
    rows_up = _round_up(rows, _SUBLANE)
    tile = min(tile, rows_up)
    if n_tc > 1 and rows_up >= 2 * n_tc * _SUBLANE:
        # 2-TC parts (v7x): shape the "parallel" row axis into an even step
        # count >= 4 so both TensorCores get balanced work and the ragged
        # trailing block does not idle one core.  Single-TC parts (v5e/v6e)
        # skip this: the grid is a serial loop there, fewer steps is better.
        target_steps = 2 * n_tc
        balanced = _round_up(-(-rows_up // target_steps), _SUBLANE)
        tile = min(tile, max(_SUBLANE, balanced))
    return tile


def _fused_layernorm_kernel(x_ref, g_ref, b_ref, o_ref, *, num_layers, eps_list):
    """Apply `num_layers` chained LayerNorms to a (tile_rows, F) block.

    x_ref: (tile_rows, F) native dtype; g_ref/b_ref: (num_layers, F) float32.
    """
    x = x_ref[...]
    if x.dtype != jnp.float32:  # no-op for f32 inputs
        x = x.astype(jnp.float32)
    g = g_ref[...]
    b = b_ref[...]
    f = x.shape[-1]
    inv_nm1 = 1.0 / (f - 1)  # unbiased (Bessel) variance, torch .std() default
    for j in range(num_layers):  # static unroll: layer chain fused in one pass
        mean = jnp.mean(x, axis=-1, keepdims=True)
        diff = x - mean
        var = jnp.sum(diff * diff, axis=-1, keepdims=True) * inv_nm1
        std = jnp.sqrt(var)
        # Exact reciprocal: the kernel is HBM-bound, so the divide is free and
        # keeps bit-level parity with the torch reference.
        inv = 1.0 / (std + eps_list[j])
        x = diff * (g[j] * inv) + b[j]
    o_ref[...] = x.astype(o_ref.dtype)


def fused_layer_norm(x, params):
    """Apply a chain of LayerNorm(a_2, b_2, eps) ops over the last axis of x.

    `params` is a list of (a_2, b_2, eps).  All layers in the chain are fused
    into a single pallas_call (one HBM read + one HBM write total).
    """
    orig_shape = x.shape
    feat = orig_shape[-1]
    num_layers = len(params)
    eps_list = tuple(float(p[2]) for p in params)

    # Lane-dense fast path requires F to be a multiple of 128.  Small / ragged
    # feature dims fall back to plain XLA with identical (f32) semantics.
    # TODO(synk): feat == 1 divides by (feat - 1) == 0 -> NaN, matching torch's
    # unbiased std; no special-casing here.
    if feat % _LANE != 0 or feat < 2:
        y = x.astype(jnp.float32)
        for a_2, b_2, eps in params:
            mean = jnp.mean(y, axis=-1, keepdims=True)
            var = jnp.sum((y - mean) ** 2, axis=-1, keepdims=True) / (feat - 1)
            y = (jnp.asarray(a_2, jnp.float32) * (y - mean)
                 / (jnp.sqrt(var) + eps) + jnp.asarray(b_2, jnp.float32))
        return y.astype(x.dtype)

    rows = 1
    for d in orig_shape[:-1]:
        rows *= d
    x2 = x.reshape(rows, feat)

    # Pre-cast the (tiny) affine params once in the wrapper; no per-step casts.
    gammas = jnp.stack([jnp.asarray(p[0], jnp.float32).reshape(feat) for p in params])
    betas = jnp.stack([jnp.asarray(p[1], jnp.float32).reshape(feat) for p in params])

    in_bytes = jnp.dtype(x.dtype).itemsize
    out_bytes = in_bytes
    vmem_cap, budget, n_tc = _tpu_memory_model()
    tile_rows = _choose_tile_rows(rows, feat, in_bytes, out_bytes, budget, n_tc)

    # No jnp.pad of the input and no output slice: the grid uses cdiv and
    # Pallas masks the trailing partial block of this row-wise op.
    grid = (pl.cdiv(rows, tile_rows),)

    # VMEM sizing: double-buffered in/out + f32 intermediates + param tiles.
    step_bytes = tile_rows * feat * (2 * (in_bytes + out_bytes) + 3 * 4)
    param_bytes = 2 * 2 * num_layers * feat * 4
    vmem_limit = max(
        min(int(step_bytes * 1.25) + param_bytes + (4 * _MIB), vmem_cap - 8 * _MIB),
        32 * _MIB,
    )

    out2 = pl.pallas_call(
        functools.partial(_fused_layernorm_kernel,
                          num_layers=num_layers, eps_list=eps_list),
        out_shape=jax.ShapeDtypeStruct((rows, feat), x.dtype),
        grid_spec=pltpu.PrefetchScalarGridSpec(
            num_scalar_prefetch=0,
            grid=grid,
            in_specs=[
                pl.BlockSpec((tile_rows, feat), lambda i: (i, 0)),
                pl.BlockSpec((num_layers, feat), lambda i: (0, 0)),
                pl.BlockSpec((num_layers, feat), lambda i: (0, 0)),
            ],
            out_specs=pl.BlockSpec((tile_rows, feat), lambda i: (i, 0)),
        ),
        compiler_params=pltpu.CompilerParams(
            dimension_semantics=("parallel",),
            vmem_limit_bytes=vmem_limit,
        ),
    )(x2, gammas, betas)

    return out2.reshape(orig_shape)


class PallasLayerNorm:
    """Annotated-Transformer LayerNorm (unbiased std, eps added to std)."""

    def __init__(self, features, eps=1e-6, a_2=None, b_2=None):
        self.a_2 = (jnp.ones((features,), jnp.float32) if a_2 is None
                    else jnp.asarray(a_2, jnp.float32))
        self.b_2 = (jnp.zeros((features,), jnp.float32) if b_2 is None
                    else jnp.asarray(b_2, jnp.float32))
        self.eps = float(eps)

    def __call__(self, x):
        return fused_layer_norm(x, [(self.a_2, self.b_2, self.eps)])


class Embedder:
    """JAX port of Embedder.forward: sequentially applies `layers` to x.

    The debug/non-debug branches of the torch module are observationally
    identical (nn.Sequential vs. a Python loop), so a single loop is used.
    Consecutive Pallas LayerNorm layers are fused into ONE pallas_call so the
    tensor streams through HBM once per fused group instead of once per layer.
    """
    # TODO(synk): default layers ResNet50_WD / position2d are external models
    # not defined in the provided spec and are not reimplemented here.

    def __init__(self, layers, debug=False):
        self.debug = debug
        self.layers = list(layers)

    def __call__(self, x):
        i, n = 0, len(self.layers)
        while i < n:
            layer = self.layers[i]
            if isinstance(layer, PallasLayerNorm):
                group = []
                while i < n and isinstance(self.layers[i], PallasLayerNorm):
                    l = self.layers[i]
                    group.append((l.a_2, l.b_2, l.eps))
                    i += 1
                x = fused_layer_norm(x, group)
            else:
                x = layer(x)
                i += 1
        return x


if __name__ == "__main__":
    key = jax.random.PRNGKey(0)

    # Lane-dense feature dim (multiple of 128); seq=60 makes rows=120, which
    # exercises the partial trailing block on 2-TC (4-step) grid shaping.
    batch, seq, features = 2, 60, 256
    k_x, k_a, k_b = jax.random.split(key, 3)
    x = jax.random.normal(k_x, (batch, seq, features), dtype=jnp.float32)

    # Two stacked LayerNorm layers -> exercises the fused-chain path.
    ln1 = PallasLayerNorm(
        features, eps=1e-6,
        a_2=1.0 + 0.1 * jax.random.normal(k_a, (features,), jnp.float32),
        b_2=0.1 * jax.random.normal(k_b, (features,), jnp.float32))
    ln2 = PallasLayerNorm(features, eps=1e-6)

    embed = Embedder(layers=[ln1, ln2])
    out = jax.block_until_ready(embed(x))

    # Pure-JAX reference (unbiased std, eps added to std), applied sequentially.
    def ref_ln(y, a, b, eps):
        mean = jnp.mean(y, axis=-1, keepdims=True)
        std = jnp.sqrt(jnp.sum((y - mean) ** 2, axis=-1, keepdims=True)
                       / (y.shape[-1] - 1))
        return a * (y - mean) / (std + eps) + b

    ref = ref_ln(ref_ln(x, ln1.a_2, ln1.b_2, ln1.eps), ln2.a_2, ln2.b_2, ln2.eps)
    assert jnp.allclose(out, ref, atol=1e-4, rtol=1e-4), "mismatch vs reference"

    # Small, non-lane-dense F exercises the XLA fallback path.
    xs = jax.random.normal(key, (2, 8, 32), dtype=jnp.float32)
    ln_s = PallasLayerNorm(32, eps=1e-6)
    outs = jax.block_until_ready(Embedder(layers=[ln_s])(xs))
    refs = ref_ln(xs, ln_s.a_2, ln_s.b_2, ln_s.eps)
    assert jnp.allclose(outs, refs, atol=1e-5, rtol=1e-5), "fallback mismatch"

    print("KERNEL_OK")
</pallas_src>

<mosaic_0001>
module attributes {stable_mosaic.version = 11 : i64} {
  func.func @_fused_layernorm_kernel(%arg0: i32, %arg1: memref<32x256xf32, #tpu.memory_space<vmem>>, %arg2: memref<2x256xf32, #tpu.memory_space<vmem>>, %arg3: memref<2x256xf32, #tpu.memory_space<vmem>>, %arg4: memref<32x256xf32, #tpu.memory_space<vmem>>) attributes {dimension_semantics = [#tpu.dimension_semantics<parallel>], iteration_bounds = array<i64: 4>, scalar_prefetch = 0 : i64, scratch_operands = 0 : i64, tpu.core_type = #tpu.core_type<tc>, window_params = [{transform_indices = @transform_0, window_bounds = array<i64: 32, 256>}, {pipeline_mode = #tpu.pipeline_mode<synchronous>, transform_indices = @transform_1, window_bounds = array<i64: 2, 256>}, {pipeline_mode = #tpu.pipeline_mode<synchronous>, transform_indices = @transform_2, window_bounds = array<i64: 2, 256>}, {transform_indices = @transform_3, window_bounds = array<i64: 32, 256>}]} {
    %c0 = arith.constant 0 : index
    %c0_0 = arith.constant 0 : index
    %0 = vector.load %arg1[%c0, %c0_0] : memref<32x256xf32, #tpu.memory_space<vmem>>, vector<32x256xf32>
    %c0_1 = arith.constant 0 : index
    %c0_2 = arith.constant 0 : index
    %1 = vector.load %arg2[%c0_1, %c0_2] : memref<2x256xf32, #tpu.memory_space<vmem>>, vector<2x256xf32>
    %c0_3 = arith.constant 0 : index
    %c0_4 = arith.constant 0 : index
    %2 = vector.load %arg3[%c0_3, %c0_4] : memref<2x256xf32, #tpu.memory_space<vmem>>, vector<2x256xf32>
    %cst = arith.constant dense<0.000000e+00> : vector<32xf32>
    %3 = vector.multi_reduction <add>, %0, %cst [1] : vector<32x256xf32> to vector<32xf32>
    %4 = vector.shape_cast %3 : vector<32xf32> to vector<32x1xf32>
    %cst_5 = arith.constant 2.560000e+02 : f32
    %5 = vector.broadcast %cst_5 : f32 to vector<32x1xf32>
    %6 = arith.divf %4, %5 : vector<32x1xf32>
    %7 = vector.broadcast %6 : vector<32x1xf32> to vector<32x256xf32>
    %8 = arith.subf %0, %7 : vector<32x256xf32>
    %9 = arith.mulf %8, %8 : vector<32x256xf32>
    %cst_6 = arith.constant dense<0.000000e+00> : vector<32xf32>
    %10 = vector.multi_reduction <add>, %9, %cst_6 [1] : vector<32x256xf32> to vector<32xf32>
    %11 = vector.shape_cast %10 : vector<32xf32> to vector<32x1xf32>
    %cst_7 = arith.constant 0.00392156886 : f32
    %12 = vector.broadcast %cst_7 : f32 to vector<32x1xf32>
    %13 = arith.mulf %11, %12 : vector<32x1xf32>
    %14 = math.sqrt %13 : vector<32x1xf32>
    %cst_8 = arith.constant 9.99999997E-7 : f32
    %15 = vector.broadcast %cst_8 : f32 to vector<32x1xf32>
    %16 = arith.addf %14, %15 : vector<32x1xf32>
    %cst_9 = arith.constant 1.000000e+00 : f32
    %17 = vector.broadcast %cst_9 : f32 to vector<32x1xf32>
    %18 = arith.divf %17, %16 : vector<32x1xf32>
    %19 = vector.extract_strided_slice %1 {offsets = [0, 0], sizes = [1, 256], strides = [1, 1]} : vector<2x256xf32> to vector<1x256xf32>
    %20 = vector.shape_cast %19 : vector<1x256xf32> to vector<256xf32>
    %21 = vector.shape_cast %20 : vector<256xf32> to vector<1x256xf32>
    %22 = vector.broadcast %21 : vector<1x256xf32> to vector<32x256xf32>
    %23 = vector.broadcast %18 : vector<32x1xf32> to vector<32x256xf32>
    %24 = arith.mulf %22, %23 : vector<32x256xf32>
    %25 = arith.mulf %8, %24 : vector<32x256xf32>
    %26 = vector.extract_strided_slice %2 {offsets = [0, 0], sizes = [1, 256], strides = [1, 1]} : vector<2x256xf32> to vector<1x256xf32>
    %27 = vector.shape_cast %26 : vector<1x256xf32> to vector<256xf32>
    %28 = vector.shape_cast %27 : vector<256xf32> to vector<1x256xf32>
    %29 = vector.broadcast %28 : vector<1x256xf32> to vector<32x256xf32>
    %30 = arith.addf %25, %29 : vector<32x256xf32>
    %cst_10 = arith.constant dense<0.000000e+00> : vector<32xf32>
    %31 = vector.multi_reduction <add>, %30, %cst_10 [1] : vector<32x256xf32> to vector<32xf32>
    %32 = vector.shape_cast %31 : vector<32xf32> to vector<32x1xf32>
    %cst_11 = arith.constant 2.560000e+02 : f32
    %33 = vector.broadcast %cst_11 : f32 to vector<32x1xf32>
    %34 = arith.divf %32, %33 : vector<32x1xf32>
    %35 = vector.broadcast %34 : vector<32x1xf32> to vector<32x256xf32>
    %36 = arith.subf %30, %35 : vector<32x256xf32>
    %37 = arith.mulf %36, %36 : vector<32x256xf32>
    %cst_12 = arith.constant dense<0.000000e+00> : vector<32xf32>
    %38 = vector.multi_reduction <add>, %37, %cst_12 [1] : vector<32x256xf32> to vector<32xf32>
    %39 = vector.shape_cast %38 : vector<32xf32> to vector<32x1xf32>
    %cst_13 = arith.constant 0.00392156886 : f32
    %40 = vector.broadcast %cst_13 : f32 to vector<32x1xf32>
    %41 = arith.mulf %39, %40 : vector<32x1xf32>
    %42 = math.sqrt %41 : vector<32x1xf32>
    %cst_14 = arith.constant 9.99999997E-7 : f32
    %43 = vector.broadcast %cst_14 : f32 to vector<32x1xf32>
    %44 = arith.addf %42, %43 : vector<32x1xf32>
    %cst_15 = arith.constant 1.000000e+00 : f32
    %45 = vector.broadcast %cst_15 : f32 to vector<32x1xf32>
    %46 = arith.divf %45, %44 : vector<32x1xf32>
    %47 = vector.extract_strided_slice %1 {offsets = [1, 0], sizes = [1, 256], strides = [1, 1]} : vector<2x256xf32> to vector<1x256xf32>
    %48 = vector.shape_cast %47 : vector<1x256xf32> to vector<256xf32>
    %49 = vector.shape_cast %48 : vector<256xf32> to vector<1x256xf32>
    %50 = vector.broadcast %49 : vector<1x256xf32> to vector<32x256xf32>
    %51 = vector.broadcast %46 : vector<32x1xf32> to vector<32x256xf32>
    %52 = arith.mulf %50, %51 : vector<32x256xf32>
    %53 = arith.mulf %36, %52 : vector<32x256xf32>
    %54 = vector.extract_strided_slice %2 {offsets = [1, 0], sizes = [1, 256], strides = [1, 1]} : vector<2x256xf32> to vector<1x256xf32>
    %55 = vector.shape_cast %54 : vector<1x256xf32> to vector<256xf32>
    %56 = vector.shape_cast %55 : vector<256xf32> to vector<1x256xf32>
    %57 = vector.broadcast %56 : vector<1x256xf32> to vector<32x256xf32>
    %58 = arith.addf %53, %57 : vector<32x256xf32>
    %c0_16 = arith.constant 0 : index
    %c0_17 = arith.constant 0 : index
    %59 = vector.load %arg4[%c0_16, %c0_17] : memref<32x256xf32, #tpu.memory_space<vmem>>, vector<32x256xf32>
    tpu.vector_store %arg4[%c0_16, %c0_17], %58 {strides = array<i32>} : memref<32x256xf32, #tpu.memory_space<vmem>>, vector<32x256xf32>,
    return
  }
  func.func @transform_0(%arg0: i32) -> (i32, i32) {
    %c0_i32 = arith.constant 0 : i32
    %c0_i32_0 = arith.constant 0 : i32
    return %arg0, %c0_i32 : i32, i32
  }
  func.func @transform_1(%arg0: i32) -> (i32, i32) {
    %c0_i32 = arith.constant 0 : i32
    %c0_i32_0 = arith.constant 0 : i32
    %c0_i32_1 = arith.constant 0 : i32
    return %c0_i32, %c0_i32_0 : i32, i32
  }
  func.func @transform_2(%arg0: i32) -> (i32, i32) {
    %c0_i32 = arith.constant 0 : i32
    %c0_i32_0 = arith.constant 0 : i32
    %c0_i32_1 = arith.constant 0 : i32
    return %c0_i32, %c0_i32_0 : i32, i32
  }
  func.func @transform_3(%arg0: i32) -> (i32, i32) {
    %c0_i32 = arith.constant 0 : i32
    %c0_i32_0 = arith.constant 0 : i32
    return %arg0, %c0_i32 : i32, i32
  }
}

</mosaic_0001>

<llo_original>
// kernel: tpu_custom_call.1
$region0: #{tpu_custom_call.1}
  #allocation0 [shape = 'u32[]', space=smem, size = 0x4, offset = 0x4, fixed_abs, tag = 'smem constant byte address 0x4 - core index']
  #allocation1 [shape = 'u32[72,128]{1,0:T(1,128)}', space=vmem, size = 0x9000, scoped, tag = 'internal scratch']
  %s0 = inlined_call_operand.hbm [shape: f32[120,256], index: 0, kind: input, shape index: {}]
  %s1 = inlined_call_operand.hbm [shape: f32[2,256], index: 1, kind: input, shape index: {}]
  %s2 = inlined_call_operand.hbm [shape: f32[2,256], index: 2, kind: input, shape index: {}]
  %s3 = inlined_call_operand.hbm [shape: f32[120,256], index: 3, kind: output, shape index: {}]
  %s4 = sld [smem:[#allocation0]]
  $region57: #{tpu_custom_call.1} parent=0
    _
  %s6 = ssub.s32 1, %s4
  %s7 = scalar_select 0, %s6, %s4
  $region1: #{tpu_custom_call.1} parent=0
    #allocation2 [shape = 'u8[65536]{0}', space=vmem, size = 0x10000, scoped, tag = 'input window, operand 0']
    #allocation3 [shape = 's32[2]{0}', space=sflag, size = 0x8, scoped, tag = 'scoped memory for tpu_custom_call.1']
    #allocation4 [shape = 's32[2]{0}', space=sflag, size = 0x8, scoped, tag = 'scoped memory for tpu_custom_call.1']
    #allocation5 [shape = 'u8[2048]{0}', space=vmem, size = 0x800, scoped, tag = 'input window, operand 1, single buffered']
    #allocation6 [shape = 's32[1]{0}', space=sflag, size = 0x4, scoped, tag = 'scoped memory for tpu_custom_call.1']
    #allocation7 [shape = 'u8[2048]{0}', space=vmem, size = 0x800, scoped, tag = 'input window, operand 2, single buffered']
    #allocation8 [shape = 'u8[65536]{0}', space=vmem, size = 0x10000, scoped, tag = 'output window, operand 0']
    %8 = vsyncpa [#allocation3], 0
    %s9 = scalar_lea.sflag [#allocation3], 1
    %10 = vsyncpa %s9, 0
    %11 = vsyncpa [#allocation6], 0
    %12 = vsyncpa [#allocation4], 0
    %s13 = scalar_lea.sflag [#allocation4], 1
    %14 = vsyncpa %s13, 0
    loop: start=0, step=1, limit=6
    $region2: #{tpu_custom_call.1} parent=1 // loop_pre_header
      _
    $region3: #{tpu_custom_call.1} parent=1 // loop_header
      %s16 = sphi 0, %s20
      %p17 = scmp.ge.s32.totalorder %s16, 6
      %s26 = sphi 0, %s28
      %s29 = sphi 0, %s26
      %s30 = sphi 0, %s29
      %s46 = sphi 0, %s30
      %s50 = sphi 0, %s50
      %s52 = sphi 0, %s50
      %s53 = sphi 0, %s52
      %s67 = sphi 0, %s53
      %s71 = sphi 0, %s71
      %s73 = sphi 0, %s71
      %s74 = sphi 0, %s73
      %s88 = sphi 0, %s74
      %s94 = sphi 0, %s96
      %s97 = sphi 0, %s94
      %s98 = sphi 0, %s97
      %s114 = sphi 0, %s98
    $region4: #{tpu_custom_call.1} parent=1 // loop_header_branch
      %19 = sbr.rel (%p17) target = $region8
    $region5: #{tpu_custom_call.1} parent=1 // loop_body
      %s21 = ssub.s32 %s16, 1
      %s22 = ssub.s32 %s16, 2
      %s23 = sadd.s32 %s16, 1
      %s24 = ssub.s32 %s16, %s23
      %p25 = scmp.eq.s32.totalorder %s24, 0
      %s27 = sadd.s32 %s26, 1
      %s28 = scalar_select %p25, %s26, %s27
      %p31 = pneg %p25
      %p32 = scmp.eq.s32.totalorder %s16, 3
      %p33 = por %p31, %p32
      %p34 = scmp.ne.s32.totalorder %s26, %s29
      %p35 = scmp.eq.s32.totalorder %s16, 0
      %p36 = por %p34, %p35
      %p37 = scmp.ne.s32.totalorder %s26, %s29
      %p38 = scmp.eq.s32.totalorder %s21, 3
      %p39 = por %p37, %p38
      %p40 = scmp.ne.s32.totalorder %s29, %s30
      %p41 = scmp.eq.s32.totalorder %s21, 0
      %p42 = por %p40, %p41
      %p43 = scmp.ne.s32.totalorder %s29, %s30
      %p44 = scmp.eq.s32.totalorder %s22, 3
      %p45 = por %p43, %p44
      %p47 = scmp.ne.s32.totalorder %s30, %s46
      %p48 = scmp.eq.s32.totalorder %s22, 0
      %p49 = por %p47, %p48
      %s51 = sadd.s32 %s50, 1
      %p54 = scmp.eq.s32.totalorder %s16, 3
      %p55 = scmp.ne.s32.totalorder %s50, %s52
      %p56 = scmp.eq.s32.totalorder %s16, 0
      %p57 = por %p55, %p56
      %p58 = scmp.ne.s32.totalorder %s50, %s52
      %p59 = scmp.eq.s32.totalorder %s21, 3
      %p60 = por %p58, %p59
      %p61 = scmp.ne.s32.totalorder %s52, %s53
      %p62 = scmp.eq.s32.totalorder %s21, 0
      %p63 = por %p61, %p62
      %p64 = scmp.ne.s32.totalorder %s52, %s53
      %p65 = scmp.eq.s32.totalorder %s22, 3
      %p66 = por %p64, %p65
      %p68 = scmp.ne.s32.totalorder %s53, %s67
      %p69 = scmp.eq.s32.totalorder %s22, 0
      %p70 = por %p68, %p69
      %s72 = sadd.s32 %s71, 1
      %p75 = scmp.eq.s32.totalorder %s16, 3
      %p76 = scmp.ne.s32.totalorder %s71, %s73
      %p77 = scmp.eq.s32.totalorder %s16, 0
      %p78 = por %p76, %p77
      %p79 = scmp.ne.s32.totalorder %s71, %s73
      %p80 = scmp.eq.s32.totalorder %s21, 3
      %p81 = por %p79, %p80
      %p82 = scmp.ne.s32.totalorder %s73, %s74
      %p83 = scmp.eq.s32.totalorder %s21, 0
      %p84 = por %p82, %p83
      %p85 = scmp.ne.s32.totalorder %s73, %s74
      %p86 = scmp.eq.s32.totalorder %s22, 3
      %p87 = por %p85, %p86
      %p89 = scmp.ne.s32.totalorder %s74, %s88
      %p90 = scmp.eq.s32.totalorder %s22, 0
      %p91 = por %p89, %p90
      %s92 = ssub.s32 %s16, %s23
      %p93 = scmp.eq.s32.totalorder %s92, 0
      %s95 = sadd.s32 %s94, 1
      %s96 = scalar_select %p93, %s94, %s95
      %p99 = pneg %p93
      %p100 = scmp.eq.s32.totalorder %s16, 3
      %p101 = por %p99, %p100
      %p102 = scmp.ne.s32.totalorder %s94, %s97
      %p103 = scmp.eq.s32.totalorder %s16, 0
      %p104 = por %p102, %p103
      %p105 = scmp.ne.s32.totalorder %s94, %s97
      %p106 = scmp.eq.s32.totalorder %s21, 3
      %p107 = por %p105, %p106
      %p108 = scmp.ne.s32.totalorder %s97, %s98
      %p109 = scmp.eq.s32.totalorder %s21, 0
      %p110 = por %p108, %p109
      %p111 = scmp.ne.s32.totalorder %s97, %s98
      %p112 = scmp.eq.s32.totalorder %s22, 3
      %p113 = por %p111, %p112
      %p115 = scmp.ne.s32.totalorder %s98, %s114
      %p116 = scmp.eq.s32.totalorder %s22, 0
      %p117 = por %p115, %p116
      %p118 = scmp.le.s32.totalorder 1, %s16
      %p119 = scmp.lt.s32.totalorder %s16, 5
      %p120 = pnand %p118, %p119
      %p121 = pneg %p120
      // Predicated region
      $region9: #{tpu_custom_call.1} parent=5 // pred_check
        _
      $region10: #{tpu_custom_call.1} parent=5 // pred_check_branch
        %123 = sbr.rel (%p120) target = $region12
      $region11: #{tpu_custom_call.1} parent=5 // pred_region
        %s124 = ssub.s32 %s16, 1
        // Predicated region
        $region13: #{tpu_custom_call.1} parent=11 // pred_check
          %p125 = pneg %p63
        $region14: #{tpu_custom_call.1} parent=11 // pred_check_branch
          %127 = sbr.rel (%p125) target = $region16
        $region15: #{tpu_custom_call.1} parent=11 // pred_region
          %129 = vsyncadd [#allocation6], 0
          %s131 = sshll.u32 %s1, 4
          %s132 = int_to_ptr.hbm [resolvable:$true] %s131
          %s133 = sshll.u32 [#allocation5], 4
          %s134 = int_to_ptr.vmem [resolvable:$true] %s133
          %136 = dma.hbm_to_vmem [thread:$0]  %s132, 64, %s134, [#allocation6]
        $region16: #{tpu_custom_call.1} parent=11 // pred_fallthru
          _
        // Predicated region
        $region17: #{tpu_custom_call.1} parent=11 // pred_check
          %p137 = pneg %p84
        $region18: #{tpu_custom_call.1} parent=11 // pred_check_branch
          %139 = sbr.rel (%p137) target = $region20
        $region19: #{tpu_custom_call.1} parent=11 // pred_region
          %141 = vsyncadd [#allocation6], 0
          %s143 = sshll.u32 %s2, 4
          %s144 = int_to_ptr.hbm [resolvable:$true] %s143
          %s145 = sshll.u32 [#allocation7], 4
          %s146 = int_to_ptr.vmem [resolvable:$true] %s145
          %148 = dma.hbm_to_vmem [thread:$0]  %s144, 64, %s146, [#allocation6]
        $region20: #{tpu_custom_call.1} parent=11 // pred_fallthru
          _
      $region12: #{tpu_custom_call.1} parent=5 // pred_fallthru
        _
      %p149 = scmp.lt.s32.totalorder %s16, 4
      // Predicated region
      $region21: #{tpu_custom_call.1} parent=5 // pred_check
        %p150 = pneg %p149
      $region22: #{tpu_custom_call.1} parent=5 // pred_check_branch
        %152 = sbr.rel (%p150) target = $region24
      $region23: #{tpu_custom_call.1} parent=5 // pred_region
        // Predicated region
        $region25: #{tpu_custom_call.1} parent=23 // pred_check
          %p153 = pneg %p36
        $region26: #{tpu_custom_call.1} parent=23 // pred_check_branch
          %155 = sbr.rel (%p153) target = $region28
        $region27: #{tpu_custom_call.1} parent=23 // pred_region
          %s156 = sand.u32 %s26, 1
          %s157 = scalar_lea.sflag [#allocation3], %s156
          %s158 = sand.u32 %s26, 1
          %s159 = smul.addr %s158, 64
          %s160 = scalar_lea.vmem [#allocation2], %s159
          %s161 = smul.u32 4, %s16
          %s162 = ssub.s32 15, %s161
          %p163 = scmp.lt.s32.totalorder %s162, 4
          %s164 = scalar_select %p163, %s162, 4
          %s165 = smul.u32 8, %s164
          %s166 = smul.u32 %s165, 2
          %s167 = ssub.s32 64, %s166
          %s168 = sshll.u32 %s167, 4
          %169 = vsyncadd %s157, %s168
          %p170 = scmp.ne.s32.totalorder 0, %s166
          %s171 = smul.addr %s161, 2
          %s172 = smul.addr %s171, 8
          %s173 = scalar_lea.hbm %s0, %s172
          %s174 = smul.u32 16, %s164
          %s175 = sshll.u32 %s173, 4
          %s176 = int_to_ptr.hbm [resolvable:$true] %s175
          %s177 = sshll.u32 %s160, 4
          %s178 = int_to_ptr.vmem [resolvable:$true] %s177
          %s179 = sshll.u32 %s174, 4
          %183 = dma.hbm_to_vmem [thread:$0]  (%p170), %s176, %s179, %s178, %s157, 256, 256, 16
        $region28: #{tpu_custom_call.1} parent=23 // pred_fallthru
          _
      $region24: #{tpu_custom_call.1} parent=5 // pred_fallthru
        _
      %p184 = scmp.le.s32.totalorder 1, %s16
      %p185 = scmp.lt.s32.totalorder %s16, 5
      %p186 = pnand %p184, %p185
      %p187 = pneg %p186
      // Predicated region
      $region29: #{tpu_custom_call.1} parent=5 // pred_check
        _
      $region30: #{tpu_custom_call.1} parent=5 // pred_check_branch
        %189 = sbr.rel (%p186) target = $region32
      $region31: #{tpu_custom_call.1} parent=5 // pred_region
        %s190 = ssub.s32 %s16, 1
        %s191 = sand.u32 %s29, 1
        %s192 = scalar_lea.sflag [#allocation3], %s191
        %s193 = sand.u32 %s29, 1
        %s194 = smul.addr %s193, 64
        %s195 = scalar_lea.vmem [#allocation2], %s194
        // Predicated region
        $region33: #{tpu_custom_call.1} parent=31 // pred_check
          %p196 = pneg %p42
        $region34: #{tpu_custom_call.1} parent=31 // pred_check_branch
          %198 = sbr.rel (%p196) target = $region36
        $region35: #{tpu_custom_call.1} parent=31 // pred_region
          %200 = dma.done %s192, 1024
        $region36: #{tpu_custom_call.1} parent=31 // pred_fallthru
          _
        // Predicated region
        $region37: #{tpu_custom_call.1} parent=31 // pred_check
          %p201 = pneg %p63
        $region38: #{tpu_custom_call.1} parent=31 // pred_check_branch
          %203 = sbr.rel (%p201) target = $region40
        $region39: #{tpu_custom_call.1} parent=31 // pred_region
          %205 = dma.done [#allocation6], 64
        $region40: #{tpu_custom_call.1} parent=31 // pred_fallthru
          _
        // Predicated region
        $region41: #{tpu_custom_call.1} parent=31 // pred_check
          %p206 = pneg %p84
        $region42: #{tpu_custom_call.1} parent=31 // pred_check_branch
          %208 = sbr.rel (%p206) target = $region44
        $region43: #{tpu_custom_call.1} parent=31 // pred_region
          %210 = dma.done [#allocation6], 64
        $region44: #{tpu_custom_call.1} parent=31 // pred_fallthru
          _
        %s211 = sand.u32 %s29, 1
        %s212 = scalar_lea.sflag [#allocation3], %s211
        %s213 = sand.u32 %s29, 1
        %s214 = smul.addr %s213, 64
        %s215 = scalar_lea.vmem [#allocation2], %s214
        %p216 = pneg %p42
        %p217 = pneg %p39
        %p218 = pneg %p63
        %p219 = pneg %p60
        %p220 = pneg %p84
        %p221 = pneg %p81
        %p222 = pneg %p110
        %p223 = pneg %p107
        %s224 = sand.u32 %s97, 1
        %s225 = scalar_lea.sflag [#allocation4], %s224
        %s226 = sand.u32 %s97, 1
        %s227 = smul.addr %s226, 64
        %s228 = scalar_lea.vmem [#allocation8], %s227
        %s229 = smul.u32 4, %s21
        %s230 = ssub.s32 15, %s229
        %p231 = scmp.lt.s32.totalorder %s230, 4
        %s232 = scalar_select %p231, %s230, 4
        %s233 = smul.u32 8, %s232
        %s234 = smul.u32 %s233, 2
        %s235 = smul.u32 4, %s21
        %s236 = ssub.s32 15, %s235
        %p237 = scmp.lt.s32.totalorder %s236, 4
        %s238 = scalar_select %p237, %s236, 4
        %s239 = smul.u32 8, %s238
        %s240 = smul.u32 %s239, 2
        %v241 = vld [vmem:[%s195] sm:$0xff]
        %v242 = vld [vmem:[%s195 + $0x8] sm:$0xff]
        %v243 = vld [vmem:[%s195 + $0x10] sm:$0xff]
        %v244 = vld [vmem:[%s195 + $0x18] sm:$0xff]
        %v245 = vld [vmem:[%s195 + $0x20] sm:$0xff]
        %v246 = vld [vmem:[%s195 + $0x28] sm:$0xff]
        %v247 = vld [vmem:[%s195 + $0x30] sm:$0xff]
        %v248 = vld [vmem:[%s195 + $0x38] sm:$0xff]
        %v249 = vld [vmem:[#allocation5] sm:$0xf]
        %v250 = vld [vmem:[#allocation7] sm:$0xf]
        %v251 = vadd.f32 %v241, %v242
        %252 = vadd.xlane.f32.xlu0 %v251
        %v253 = vpop.xlane.xlu0 %252
        %v254 = vadd.f32 %v243, %v244
        %255 = vadd.xlane.f32.xlu0 %v254
        %v256 = vpop.xlane.xlu0 %255
        %v257 = vadd.f32 %v245, %v246
        %258 = vadd.xlane.f32.xlu0 %v257
        %v259 = vpop.xlane.xlu0 %258
        %v260 = vadd.f32 %v247, %v248
        %261 = vadd.xlane.f32.xlu0 %v260
        %v262 = vpop.xlane.xlu0 %261
        %v263 = vrcp.pop 256.0
        %v264 = vmul.f32 256.0, %v263
        %v265 = vsub.f32 1.0, %v264
        %v266 = vmul.f32 %v263, %v265
        %v267 = vadd.f32 %v263, %v266
        %vm268 = vweird.f32 %v263
        %v269 = vsel %vm268, %v263, %v267
        %v270 = vmul.f32 %v253, %v269
        %v271 = vmul.f32 %v256, %v269
        %v272 = vmul.f32 %v259, %v269
        %v273 = vmul.f32 %v262, %v269
        %v274 = vsub.f32 %v241, %v270
        %v275 = vsub.f32 %v242, %v270
        %v276 = vsub.f32 %v243, %v271
        %v277 = vsub.f32 %v244, %v271
        %v278 = vsub.f32 %v245, %v272
        %v279 = vsub.f32 %v246, %v272
        %v280 = vsub.f32 %v247, %v273
        %v281 = vsub.f32 %v248, %v273
        %v282 = vmul.f32 %v274, %v274
        %v283 = vmul.f32 %v275, %v275
        %v284 = vmul.f32 %v276, %v276
        %v285 = vmul.f32 %v277, %v277
        %v286 = vmul.f32 %v278, %v278
        %v287 = vmul.f32 %v279, %v279
        %v288 = vmul.f32 %v280, %v280
        %v289 = vmul.f32 %v281, %v281
        %v290 = vadd.f32 %v282, %v283
        %291 = vadd.xlane.f32.xlu0 %v290
        %v292 = vpop.xlane.xlu0 %291
        %v293 = vadd.f32 %v284, %v285
        %294 = vadd.xlane.f32.xlu0 %v293
        %v295 = vpop.xlane.xlu0 %294
        %v296 = vadd.f32 %v286, %v287
        %297 = vadd.xlane.f32.xlu0 %v296
        %v298 = vpop.xlane.xlu0 %297
        %v299 = vadd.f32 %v288, %v289
        %300 = vadd.xlane.f32.xlu0 %v299
        %v301 = vpop.xlane.xlu0 %300
        %v302 = vmul.f32 %v292, 0.003921569
        %v303 = vmul.f32 %v295, 0.003921569
        %v304 = vmul.f32 %v298, 0.003921569
        %v305 = vmul.f32 %v301, 0.003921569
        %v306 = vrsqrt.pop %v302
        %v307 = vmul.f32 %v306, %v302
        %v308 = vmul.f32 %v307, %v306
        %v309 = vmul.f32 0.5, %v308
        %v310 = vsub.f32 1.5, %v309
        %v311 = vmul.f32 %v306, %v310
        %v312 = vmul.f32 %v302, %v311
        %vm313 = vcmp.eq.f32.partialorder %v302, inf
        %v314 = vsel %vm313, %v302, %v312
        %vm315 = vcmp.eq.f32.partialorder %v302, 0.0
        %v316 = vand.u32 %v302, 2147483648
        %v317 = vsel %vm315, %v316, %v314
        %v318 = vrsqrt.pop %v303
        %v319 = vmul.f32 %v318, %v303
        %v320 = vmul.f32 %v319, %v318
        %v321 = vmul.f32 0.5, %v320
        %v322 = vsub.f32 1.5, %v321
        %v323 = vmul.f32 %v318, %v322
        %v324 = vmul.f32 %v303, %v323
        %vm325 = vcmp.eq.f32.partialorder %v303, inf
        %v326 = vsel %vm325, %v303, %v324
        %vm327 = vcmp.eq.f32.partialorder %v303, 0.0
        %v328 = vand.u32 %v303, 2147483648
        %v329 = vsel %vm327, %v328, %v326
        %v330 = vrsqrt.pop %v304
        %v331 = vmul.f32 %v330, %v304
        %v332 = vmul.f32 %v331, %v330
        %v333 = vmul.f32 0.5, %v332
        %v334 = vsub.f32 1.5, %v333
        %v335 = vmul.f32 %v330, %v334
        %v336 = vmul.f32 %v304, %v335
        %vm337 = vcmp.eq.f32.partialorder %v304, inf
        %v338 = vsel %vm337, %v304, %v336
        %vm339 = vcmp.eq.f32.partialorder %v304, 0.0
        %v340 = vand.u32 %v304, 2147483648
        %v341 = vsel %vm339, %v340, %v338
        %v342 = vrsqrt.pop %v305
        %v343 = vmul.f32 %v342, %v305
        %v344 = vmul.f32 %v343, %v342
        %v345 = vmul.f32 0.5, %v344
        %v346 = vsub.f32 1.5, %v345
        %v347 = vmul.f32 %v342, %v346
        %v348 = vmul.f32 %v305, %v347
        %vm349 = vcmp.eq.f32.partialorder %v305, inf
        %v350 = vsel %vm349, %v305, %v348
        %vm351 = vcmp.eq.f32.partialorder %v305, 0.0
        %v352 = vand.u32 %v305, 2147483648
        %v353 = vsel %vm351, %v352, %v350
        %v354 = vadd.f32 %v317, 1e-06
        %v355 = vadd.f32 %v329, 1e-06
        %v356 = vadd.f32 %v341, 1e-06
        %v357 = vadd.f32 %v353, 1e-06
        %v358 = vrcp.pop %v354
        %v359 = vmul.f32 %v354, %v358
        %v360 = vsub.f32 1.0, %v359
        %v361 = vmul.f32 %v358, %v360
        %v362 = vadd.f32 %v358, %v361
        %vm363 = vweird.f32 %v354
        %vm364 = vweird.f32 %v358
        %vm365 = vmor %vm363, %vm364
        %v366 = vsel %vm365, %v358, %v362
        %v367 = vand.u32 2147483647, %v354
        %vm368 = vcmp.eq.f32.partialorder %v367, 8.507059e+37
        %v369 = vand.u32 %v354, 2147483648
        %v370 = vor.u32 1.1754944e-38, %v369
        %v371 = vsel %vm368, %v370, %v366
        %v372 = vmul.f32 1.0, %v371
        %v373 = vrcp.pop %v355
        %v374 = vmul.f32 %v355, %v373
        %v375 = vsub.f32 1.0, %v374
        %v376 = vmul.f32 %v373, %v375
        %v377 = vadd.f32 %v373, %v376
        %vm378 = vweird.f32 %v355
        %vm379 = vweird.f32 %v373
        %vm380 = vmor %vm378, %vm379
        %v381 = vsel %vm380, %v373, %v377
        %v382 = vand.u32 2147483647, %v355
        %vm383 = vcmp.eq.f32.partialorder %v382, 8.507059e+37
        %v384 = vand.u32 %v355, 2147483648
        %v385 = vor.u32 1.1754944e-38, %v384
        %v386 = vsel %vm383, %v385, %v381
        %v387 = vmul.f32 1.0, %v386
        %v388 = vrcp.pop %v356
        %v389 = vmul.f32 %v356, %v388
        %v390 = vsub.f32 1.0, %v389
        %v391 = vmul.f32 %v388, %v390
        %v392 = vadd.f32 %v388, %v391
        %vm393 = vweird.f32 %v356
        %vm394 = vweird.f32 %v388
        %vm395 = vmor %vm393, %vm394
        %v396 = vsel %vm395, %v388, %v392
        %v397 = vand.u32 2147483647, %v356
        %vm398 = vcmp.eq.f32.partialorder %v397, 8.507059e+37
        %v399 = vand.u32 %v356, 2147483648
        %v400 = vor.u32 1.1754944e-38, %v399
        %v401 = vsel %vm398, %v400, %v396
        %v402 = vmul.f32 1.0, %v401
        %v403 = vrcp.pop %v357
        %v404 = vmul.f32 %v357, %v403
        %v405 = vsub.f32 1.0, %v404
        %v406 = vmul.f32 %v403, %v405
        %v407 = vadd.f32 %v403, %v406
        %vm408 = vweird.f32 %v357
        %vm409 = vweird.f32 %v403
        %vm410 = vmor %vm408, %vm409
        %v411 = vsel %vm410, %v403, %v407
        %v412 = vand.u32 2147483647, %v357
        %vm413 = vcmp.eq.f32.partialorder %v412, 8.507059e+37
        %v414 = vand.u32 %v357, 2147483648
        %v415 = vor.u32 1.1754944e-38, %v414
        %v416 = vsel %vm413, %v415, %v411
        %v417 = vmul.f32 1.0, %v416
        %v419 = vperm.slane %v249, 0
        %v420 = vperm.slane %v249, 2
        %v423 = vperm.slane %v419, 0
        %v424 = vperm.slane %v420, 0
        %v425 = vmul.f32 %v423, %v372
        %v426 = vmul.f32 %v424, %v372
        %v427 = vmul.f32 %v423, %v387
        %v428 = vmul.f32 %v424, %v387
        %v429 = vmul.f32 %v423, %v402
        %v430 = vmul.f32 %v424, %v402
        %v431 = vmul.f32 %v423, %v417
        %v432 = vmul.f32 %v424, %v417
        %v433 = vmul.f32 %v274, %v425
        %v434 = vmul.f32 %v275, %v426
        %v435 = vmul.f32 %v276, %v427
        %v436 = vmul.f32 %v277, %v428
        %v437 = vmul.f32 %v278, %v429
        %v438 = vmul.f32 %v279, %v430
        %v439 = vmul.f32 %v280, %v431
        %v440 = vmul.f32 %v281, %v432
        %v442 = vperm.slane %v250, 0
        %v443 = vperm.slane %v250, 2
        %v446 = vperm.slane %v442, 0
        %v447 = vperm.slane %v443, 0
        %v448 = vadd.f32 %v433, %v446
        %v449 = vadd.f32 %v434, %v447
        %v450 = vadd.f32 %v435, %v446
        %v451 = vadd.f32 %v436, %v447
        %v452 = vadd.f32 %v437, %v446
        %v453 = vadd.f32 %v438, %v447
        %v454 = vadd.f32 %v439, %v446
        %v455 = vadd.f32 %v440, %v447
        %v456 = vadd.f32 %v448, %v449
        %457 = vadd.xlane.f32.xlu0 %v456
        %v458 = vpop.xlane.xlu0 %457
        %v459 = vadd.f32 %v450, %v451
        %460 = vadd.xlane.f32.xlu0 %v459
        %v461 = vpop.xlane.xlu0 %460
        %v462 = vadd.f32 %v452, %v453
        %463 = vadd.xlane.f32.xlu0 %v462
        %v464 = vpop.xlane.xlu0 %463
        %v465 = vadd.f32 %v454, %v455
        %466 = vadd.xlane.f32.xlu0 %v465
        %v467 = vpop.xlane.xlu0 %466
        %v468 = vmul.f32 %v458, %v269
        %v469 = vmul.f32 %v461, %v269
        %v470 = vmul.f32 %v464, %v269
        %v471 = vmul.f32 %v467, %v269
        %v472 = vsub.f32 %v448, %v468
        %v473 = vsub.f32 %v449, %v468
        %v474 = vsub.f32 %v450, %v469
        %v475 = vsub.f32 %v451, %v469
        %v476 = vsub.f32 %v452, %v470
        %v477 = vsub.f32 %v453, %v470
        %v478 = vsub.f32 %v454, %v471
        %v479 = vsub.f32 %v455, %v471
        %v480 = vmul.f32 %v472, %v472
        %v481 = vmul.f32 %v473, %v473
        %v482 = vmul.f32 %v474, %v474
        %v483 = vmul.f32 %v475, %v475
        %v484 = vmul.f32 %v476, %v476
        %v485 = vmul.f32 %v477, %v477
        %v486 = vmul.f32 %v478, %v478
        %v487 = vmul.f32 %v479, %v479
        %v488 = vadd.f32 %v480, %v481
        %489 = vadd.xlane.f32.xlu0 %v488
        %v490 = vpop.xlane.xlu0 %489
        %v491 = vadd.f32 %v482, %v483
        %492 = vadd.xlane.f32.xlu0 %v491
        %v493 = vpop.xlane.xlu0 %492
        %v494 = vadd.f32 %v484, %v485
        %495 = vadd.xlane.f32.xlu0 %v494
        %v496 = vpop.xlane.xlu0 %495
        %v497 = vadd.f32 %v486, %v487
        %498 = vadd.xlane.f32.xlu0 %v497
        %v499 = vpop.xlane.xlu0 %498
        %v500 = vmul.f32 %v490, 0.003921569
        %v501 = vmul.f32 %v493, 0.003921569
        %v502 = vmul.f32 %v496, 0.003921569
        %v503 = vmul.f32 %v499, 0.003921569
        %v504 = vrsqrt.pop %v500
        %v505 = vmul.f32 %v504, %v500
        %v506 = vmul.f32 %v505, %v504
        %v507 = vmul.f32 0.5, %v506
        %v508 = vsub.f32 1.5, %v507
        %v509 = vmul.f32 %v504, %v508
        %v510 = vmul.f32 %v500, %v509
        %vm511 = vcmp.eq.f32.partialorder %v500, inf
        %v512 = vsel %vm511, %v500, %v510
        %vm513 = vcmp.eq.f32.partialorder %v500, 0.0
        %v514 = vand.u32 %v500, 2147483648
        %v515 = vsel %vm513, %v514, %v512
        %v516 = vrsqrt.pop %v501
        %v517 = vmul.f32 %v516, %v501
        %v518 = vmul.f32 %v517, %v516
        %v519 = vmul.f32 0.5, %v518
        %v520 = vsub.f32 1.5, %v519
        %v521 = vmul.f32 %v516, %v520
        %v522 = vmul.f32 %v501, %v521
        %vm523 = vcmp.eq.f32.partialorder %v501, inf
        %v524 = vsel %vm523, %v501, %v522
        %vm525 = vcmp.eq.f32.partialorder %v501, 0.0
        %v526 = vand.u32 %v501, 2147483648
        %v527 = vsel %vm525, %v526, %v524
        %v528 = vrsqrt.pop %v502
        %v529 = vmul.f32 %v528, %v502
        %v530 = vmul.f32 %v529, %v528
        %v531 = vmul.f32 0.5, %v530
        %v532 = vsub.f32 1.5, %v531
        %v533 = vmul.f32 %v528, %v532
        %v534 = vmul.f32 %v502, %v533
        %vm535 = vcmp.eq.f32.partialorder %v502, inf
        %v536 = vsel %vm535, %v502, %v534
        %vm537 = vcmp.eq.f32.partialorder %v502, 0.0
        %v538 = vand.u32 %v502, 2147483648
        %v539 = vsel %vm537, %v538, %v536
        %v540 = vrsqrt.pop %v503
        %v541 = vmul.f32 %v540, %v503
        %v542 = vmul.f32 %v541, %v540
        %v543 = vmul.f32 0.5, %v542
        %v544 = vsub.f32 1.5, %v543
        %v545 = vmul.f32 %v540, %v544
        %v546 = vmul.f32 %v503, %v545
        %vm547 = vcmp.eq.f32.partialorder %v503, inf
        %v548 = vsel %vm547, %v503, %v546
        %vm549 = vcmp.eq.f32.partialorder %v503, 0.0
        %v550 = vand.u32 %v503, 2147483648
        %v551 = vsel %vm549, %v550, %v548
        %v552 = vadd.f32 %v515, 1e-06
        %v553 = vadd.f32 %v527, 1e-06
        %v554 = vadd.f32 %v539, 1e-06
        %v555 = vadd.f32 %v551, 1e-06
        %v556 = vrcp.pop %v552
        %v557 = vmul.f32 %v552, %v556
        %v558 = vsub.f32 1.0, %v557
        %v559 = vmul.f32 %v556, %v558
        %v560 = vadd.f32 %v556, %v559
        %vm561 = vweird.f32 %v552
        %vm562 = vweird.f32 %v556
        %vm563 = vmor %vm561, %vm562
        %v564 = vsel %vm563, %v556, %v560
        %v565 = vand.u32 2147483647, %v552
        %vm566 = vcmp.eq.f32.partialorder %v565, 8.507059e+37
        %v567 = vand.u32 %v552, 2147483648
        %v568 = vor.u32 1.1754944e-38, %v567
        %v569 = vsel %vm566, %v568, %v564
        %v570 = vmul.f32 1.0, %v569
        %v571 = vrcp.pop %v553
        %v572 = vmul.f32 %v553, %v571
        %v573 = vsub.f32 1.0, %v572
        %v574 = vmul.f32 %v571, %v573
        %v575 = vadd.f32 %v571, %v574
        %vm576 = vweird.f32 %v553
        %vm577 = vweird.f32 %v571
        %vm578 = vmor %vm576, %vm577
        %v579 = vsel %vm578, %v571, %v575
        %v580 = vand.u32 2147483647, %v553
        %vm581 = vcmp.eq.f32.partialorder %v580, 8.507059e+37
        %v582 = vand.u32 %v553, 2147483648
        %v583 = vor.u32 1.1754944e-38, %v582
        %v584 = vsel %vm581, %v583, %v579
        %v585 = vmul.f32 1.0, %v584
        %v586 = vrcp.pop %v554
        %v587 = vmul.f32 %v554, %v586
        %v588 = vsub.f32 1.0, %v587
        %v589 = vmul.f32 %v586, %v588
        %v590 = vadd.f32 %v586, %v589
        %vm591 = vweird.f32 %v554
        %vm592 = vweird.f32 %v586
        %vm593 = vmor %vm591, %vm592
        %v594 = vsel %vm593, %v586, %v590
        %v595 = vand.u32 2147483647, %v554
        %vm596 = vcmp.eq.f32.partialorder %v595, 8.507059e+37
        %v597 = vand.u32 %v554, 2147483648
        %v598 = vor.u32 1.1754944e-38, %v597
        %v599 = vsel %vm596, %v598, %v594
        %v600 = vmul.f32 1.0, %v599
        %v601 = vrcp.pop %v555
        %v602 = vmul.f32 %v555, %v601
        %v603 = vsub.f32 1.0, %v602
        %v604 = vmul.f32 %v601, %v603
        %v605 = vadd.f32 %v601, %v604
        %vm606 = vweird.f32 %v555
        %vm607 = vweird.f32 %v601
        %vm608 = vmor %vm606, %vm607
        %v609 = vsel %vm608, %v601, %v605
        %v610 = vand.u32 2147483647, %v555
        %vm611 = vcmp.eq.f32.partialorder %v610, 8.507059e+37
        %v612 = vand.u32 %v555, 2147483648
        %v613 = vor.u32 1.1754944e-38, %v612
        %v614 = vsel %vm611, %v613, %v609
        %v615 = vmul.f32 1.0, %v614
        %v616 = vperm.slane %v249, 1
        %v617 = vperm.slane %v249, 3
        %v620 = vperm.slane %v616, 1
        %v621 = vperm.slane %v617, 1
        %v622 = vmul.f32 %v620, %v570
        %v623 = vmul.f32 %v621, %v570
        %v624 = vmul.f32 %v620, %v585
        %v625 = vmul.f32 %v621, %v585
        %v626 = vmul.f32 %v620, %v600
        %v627 = vmul.f32 %v621, %v600
        %v628 = vmul.f32 %v620, %v615
        %v629 = vmul.f32 %v621, %v615
        %v630 = vmul.f32 %v472, %v622
        %v631 = vmul.f32 %v473, %v623
        %v632 = vmul.f32 %v474, %v624
        %v633 = vmul.f32 %v475, %v625
        %v634 = vmul.f32 %v476, %v626
        %v635 = vmul.f32 %v477, %v627
        %v636 = vmul.f32 %v478, %v628
        %v637 = vmul.f32 %v479, %v629
        %v638 = vperm.slane %v250, 1
        %v639 = vperm.slane %v250, 3
        %v642 = vperm.slane %v638, 1
        %v643 = vperm.slane %v639, 1
        %v644 = vadd.f32 %v630, %v642
        %v645 = vadd.f32 %v631, %v643
        %v646 = vadd.f32 %v632, %v642
        %v647 = vadd.f32 %v633, %v643
        %v648 = vadd.f32 %v634, %v642
        %v649 = vadd.f32 %v635, %v643
        %v650 = vadd.f32 %v636, %v642
        %v651 = vadd.f32 %v637, %v643
        %652 = vst [vmem:[%s228] sm:$0xff] %v644
        %653 = vst [vmem:[%s228 + $0x8] sm:$0xff] %v645
        %654 = vst [vmem:[%s228 + $0x10] sm:$0xff] %v646
        %655 = vst [vmem:[%s228 + $0x18] sm:$0xff] %v647
        %656 = vst [vmem:[%s228 + $0x20] sm:$0xff] %v648
        %657 = vst [vmem:[%s228 + $0x28] sm:$0xff] %v649
        %658 = vst [vmem:[%s228 + $0x30] sm:$0xff] %v650
        %659 = vst [vmem:[%s228 + $0x38] sm:$0xff] %v651
        %s660 = sand.u32 %s97, 1
        %s661 = scalar_lea.sflag [#allocation4], %s660
        %s662 = sand.u32 %s97, 1
        %s663 = smul.addr %s662, 64
        %s664 = scalar_lea.vmem [#allocation8], %s663
        // Predicated region
        $region45: #{tpu_custom_call.1} parent=31 // pred_check
          %p665 = pneg %p107
        $region46: #{tpu_custom_call.1} parent=31 // pred_check_branch
          %667 = sbr.rel (%p665) target = $region48
        $region47: #{tpu_custom_call.1} parent=31 // pred_region
          %s668 = smul.u32 4, %s21
          %s669 = ssub.s32 15, %s668
          %p670 = scmp.lt.s32.totalorder %s669, 4
          %s671 = scalar_select %p670, %s669, 4
          %s672 = smul.u32 8, %s671
          %s673 = smul.u32 %s672, 2
          %s674 = ssub.s32 64, %s673
          %s675 = sshll.u32 %s674, 4
          %676 = vsyncadd %s661, %s675
          %p677 = scmp.ne.s32.totalorder 0, %s673
          %s678 = smul.addr %s668, 2
          %s679 = smul.addr %s678, 8
          %s680 = scalar_lea.hbm %s3, %s679
          %s681 = smul.u32 16, %s671
          %s682 = sshll.u32 %s664, 4
          %s683 = int_to_ptr.vmem [resolvable:$true] %s682
          %s684 = sshll.u32 %s680, 4
          %s685 = int_to_ptr.hbm [resolvable:$true] %s684
          %s686 = sshll.u32 %s681, 4
          %690 = dma.vmem_to_hbm [thread:$0]  (%p677), %s683, %s686, %s685, %s661, 256, 256, 16
        $region48: #{tpu_custom_call.1} parent=31 // pred_fallthru
          _
      $region32: #{tpu_custom_call.1} parent=5 // pred_fallthru
        _
      %p691 = scmp.le.s32.totalorder 2, %s16
      // Predicated region
      $region49: #{tpu_custom_call.1} parent=5 // pred_check
        %p692 = pneg %p691
      $region50: #{tpu_custom_call.1} parent=5 // pred_check_branch
        %694 = sbr.rel (%p692) target = $region52
      $region51: #{tpu_custom_call.1} parent=5 // pred_region
        %s695 = ssub.s32 %s16, 2
        // Predicated region
        $region53: #{tpu_custom_call.1} parent=51 // pred_check
          %p696 = pneg %p113
        $region54: #{tpu_custom_call.1} parent=51 // pred_check_branch
          %698 = sbr.rel (%p696) target = $region56
        $region55: #{tpu_custom_call.1} parent=51 // pred_region
          %s699 = sand.u32 %s98, 1
          %s700 = scalar_lea.sflag [#allocation4], %s699
          %s701 = sand.u32 %s98, 1
          %s702 = smul.addr %s701, 64
          %s703 = scalar_lea.vmem [#allocation8], %s702
          %705 = dma.done %s700, 1024
        $region56: #{tpu_custom_call.1} parent=51 // pred_fallthru
          _
      $region52: #{tpu_custom_call.1} parent=5 // pred_fallthru
        _
    $region6: #{tpu_custom_call.1} parent=1 // loop_footer
      %s20 = sadd.s32 1, %s16
    $region7: #{tpu_custom_call.1} parent=1 // loop_footer_branch
      %15 = sbr.rel target = $region3
    $region8: #{tpu_custom_call.1} parent=1 // loop_exit
      _
    %706 = vsyncpa [#allocation3], 1
    %s707 = scalar_lea.sflag [#allocation3], 1
    %708 = vsyncpa %s707, 1
    %709 = vsyncpa [#allocation6], 1
    %710 = vsyncpa [#allocation4], 1
    %s711 = scalar_lea.sflag [#allocation4], 1
    %712 = vsyncpa %s711, 1

</llo_original>
